<compile_context>
chip_gen: v7x
topology: tpu7x:2x2x1
jax: 0.10.0
libtpu: 0.0.40
codegen_flags: <defaults>
</compile_context>

<pallas_src>
import functools

import jax
import jax.numpy as jnp
from jax.experimental import pallas as pl
from jax.experimental.pallas import tpu as pltpu

PAD_BYTE = 0  # module's ignore_index default (stand-in for the module constant)


def _round_up(x, m):
    return ((x + m - 1) // m) * m


def _vmem_capacity_bytes():
    try:
        return int(pltpu.get_tpu_info().vmem_capacity_bytes)
    except Exception:
        return 64 << 20  # conservative fallback: v7x per-TensorCore physical VMEM


def _pick_row_tile(N, C, itemsize):
    """Row tile from a generation-aware VMEM budget; always a multiple of 8."""
    budget = int(_vmem_capacity_bytes() * 0.4)     # leave room for double buffers
    per_row = C * (2 * itemsize + 4 * 4)           # 2x-buffered input + ~4 f32 temps
    tn = max(8, budget // max(per_row, 1))
    # Keep each logits block >= ~2 MiB when C is small; cap the absolute row count.
    cap = max(2048, pl.cdiv(2 << 20, max(C * itemsize, 1)))
    tn = min(tn, cap, 1 << 15)
    tn = max(8, min((tn // 8) * 8, _round_up(N, 8)))
    if N >= 16:
        # v7x has two TensorCores: prefer an even grid (>= 8 steps when blocks stay
        # comfortably large) so "parallel" sharding is balanced across cores.
        steps = max(pl.cdiv(N, tn), 2)
        if N * C * itemsize >= 8 * (512 << 10):
            steps = max(steps, 8)
        if steps % 2:
            steps += 1
        tn = min(tn, max(8, _round_up(pl.cdiv(N, steps), 8)))
    return tn


def _pow_gamma(base, gamma):
    # Specialize common exponents: float pow lowers to exp(gamma*log(x)) (2 EUP
    # transcendentals) and can NaN at base==0 when gamma==0; sqrt/mul are cheaper.
    if gamma == 0.0:
        return jnp.ones_like(base)
    if gamma == 0.5:
        return jnp.sqrt(base)
    if gamma == 1.0:
        return base
    if gamma == 2.0:
        return base * base
    return jnp.power(base, gamma)


def _focal_rows(logits, tgt, *, alpha, gamma, ignore_index):
    """Per-row focal loss. logits (TN, C) native dtype, tgt (TN, 1) int32 -> (TN, 1) f32."""
    col = jax.lax.broadcasted_iota(jnp.int32, logits.shape, 1)          # (TN, C)
    onehot = col == tgt                                                 # (TN, C)
    # Target-class gather and row max stay in the NATIVE dtype (bf16 packs two
    # elements per lane on the VALU); exactly one non-zero per row so the narrow
    # sum is exact.  Only the exp/logsumexp path is upcast to f32.
    zero = jnp.zeros((), logits.dtype)
    tgt_logit = jnp.sum(jnp.where(onehot, logits, zero), axis=-1,
                        keepdims=True).astype(jnp.float32)              # (TN, 1)
    m = jnp.max(logits, axis=-1, keepdims=True).astype(jnp.float32)     # (TN, 1)
    x = logits.astype(jnp.float32)
    lse = m + jnp.log(jnp.sum(jnp.exp(x - m), axis=-1, keepdims=True))  # (TN, 1)
    # cross_entropy(reduction='none', ignore_index): 0 for ignored rows.
    ce = jnp.where(tgt != ignore_index, lse - tgt_logit, 0.0)           # (TN, 1)
    # focal = alpha * (1 - pt)^gamma * ce,  pt = exp(-ce)
    pt = jnp.exp(-ce)
    base = jnp.maximum(1.0 - pt, 0.0)                                   # clamp fp noise
    return alpha * _pow_gamma(base, gamma) * ce


def _row_mask(tile_rows, n_rows):
    """(tile_rows, 1) bool mask that is False for rows past the true N."""
    row = pl.program_id(0) * tile_rows + jax.lax.broadcasted_iota(
        jnp.int32, (tile_rows, 1), 0)
    return row < n_rows


def _focal_persample_kernel(logits_ref, targets_ref, out_ref, *,
                            alpha, gamma, ignore_index, n_rows):
    # out_ref: (TN, 1) f32 per-sample loss (reduction='none' path).
    focal = _focal_rows(logits_ref[...], targets_ref[...],
                        alpha=alpha, gamma=gamma, ignore_index=ignore_index)
    # Mask garbage tail rows AFTER the per-row math (rows are independent, so the
    # garbage in the partial last block cannot contaminate valid rows).
    out_ref[...] = jnp.where(_row_mask(out_ref.shape[0], n_rows), focal, 0.0)


def _focal_partial_kernel(logits_ref, targets_ref, out_ref, *,
                          alpha, gamma, ignore_index, n_rows):
    # out_ref: (8, 128) f32 -- the tile's partial sum splatted into a lane-dense
    # block (single unmasked vst); the wrapper divides the dense reduce by 1024.
    focal = _focal_rows(logits_ref[...], targets_ref[...],
                        alpha=alpha, gamma=gamma, ignore_index=ignore_index)
    focal = jnp.where(_row_mask(logits_ref.shape[0], n_rows), focal, 0.0)
    tile_sum = jnp.sum(focal, axis=0, keepdims=True)                    # (1, 1)
    out_ref[...] = jnp.broadcast_to(tile_sum, out_ref.shape)


def focal_loss(logits, targets, *, alpha=1.0, gamma=0.5, reduction="mean",
               ignore_index=PAD_BYTE, block_n=None, vmem_limit_bytes=None):
    """Pallas TPU focal loss. logits: (N, C) float (f32/bf16), targets: (N,) int."""
    N, C = logits.shape
    itemsize = jnp.dtype(logits.dtype).itemsize
    if block_n is None:
        tn = _pick_row_tile(N, C, itemsize)
    else:
        tn = max(8, (int(block_n) // 8) * 8)
    grid = pl.cdiv(N, tn)

    # TODO(synk): for vocab-scale C (>~64k f32) a single (tn, C) block can exceed
    # v7x's 64 MiB VMEM; that case needs class-axis chunking with an online
    # logsumexp, which is not implemented here.

    targets2d = targets.reshape(N, 1).astype(jnp.int32)

    if vmem_limit_bytes is None:
        work = 2 * tn * C * itemsize + 5 * tn * C * 4 + (4 << 20)
        vmem_limit_bytes = int(min(_vmem_capacity_bytes(), max(work, 32 << 20)))

    kparams = dict(alpha=float(alpha), gamma=float(gamma),
                   ignore_index=int(ignore_index), n_rows=int(N))
    compiler_params = pltpu.CompilerParams(
        dimension_semantics=("parallel",),
        vmem_limit_bytes=int(vmem_limit_bytes),
    )
    in_specs = [
        pl.BlockSpec((tn, C), lambda i: (i, 0)),
        pl.BlockSpec((tn, 1), lambda i: (i, 0)),
    ]
    flops = int(6 * N * C + 12 * N)
    transcendentals = int(N * C + 3 * N)
    in_bytes = int(N * C * itemsize + N * 4)

    if reduction in ("mean", "sum"):
        cost = pl.CostEstimate(flops=flops, transcendentals=transcendentals,
                               bytes_accessed=in_bytes + grid * 8 * 128 * 4)
        partials = pl.pallas_call(
            functools.partial(_focal_partial_kernel, **kparams),
            out_shape=jax.ShapeDtypeStruct((grid * 8, 128), jnp.float32),
            grid_spec=pltpu.PrefetchScalarGridSpec(
                num_scalar_prefetch=0,
                grid=(grid,),
                in_specs=in_specs,
                out_specs=pl.BlockSpec((8, 128), lambda i: (i, 0)),
            ),
            compiler_params=compiler_params,
            cost_estimate=cost,
        )(logits, targets2d)
        # Each (8,128) block holds the same tile sum in all 1024 lanes, so a plain
        # dense reduce (no strided gather) recovers the grand total exactly.
        total = partials.sum() * (1.0 / 1024.0)
        if reduction == "mean":
            # Module semantics: mean over all N rows (including ignored ones).
            return total / jnp.float32(N)
        return total

    if reduction != "none":
        raise ValueError(f"unknown reduction: {reduction!r}")

    # reduction == 'none': per-sample losses.  The (tn, 1) output block lowers to
    # masked stores, but for realistic class counts it is a tiny fraction of the
    # (tn, C) input DMA and stays hidden under it.
    out_rows = grid * tn
    cost = pl.CostEstimate(flops=flops, transcendentals=transcendentals,
                           bytes_accessed=in_bytes + out_rows * 4)
    per_sample = pl.pallas_call(
        functools.partial(_focal_persample_kernel, **kparams),
        out_shape=jax.ShapeDtypeStruct((out_rows, 1), jnp.float32),
        grid_spec=pltpu.PrefetchScalarGridSpec(
            num_scalar_prefetch=0,
            grid=(grid,),
            in_specs=in_specs,
            out_specs=pl.BlockSpec((tn, 1), lambda i: (i, 0)),
        ),
        compiler_params=compiler_params,
        cost_estimate=cost,
    )(logits, targets2d)
    return per_sample[:N, 0]


def _focal_loss_ref(logits, targets, *, alpha=1.0, gamma=0.5, reduction="mean",
                    ignore_index=PAD_BYTE):
    """Pure-JAX reference matching F.cross_entropy(ignore_index, 'none') + focal."""
    logits = logits.astype(jnp.float32)
    lse = jax.nn.logsumexp(logits, axis=-1)
    tgt_logit = jnp.take_along_axis(logits, targets[:, None].astype(jnp.int32),
                                    axis=-1)[:, 0]
    ce = jnp.where(targets == ignore_index, 0.0, lse - tgt_logit)
    pt = jnp.exp(-ce)
    focal = alpha * jnp.maximum(1.0 - pt, 0.0) ** gamma * ce
    if reduction == "mean":
        return focal.mean()
    elif reduction == "sum":
        return focal.sum()
    return focal


if __name__ == "__main__":
    key = jax.random.PRNGKey(0)
    k1, k2 = jax.random.split(key)

    N, C = 200, 256  # N is not a multiple of the chosen row tile -> exercises tail masking
    logits = jax.random.normal(k1, (N, C), dtype=jnp.float32)
    targets = jax.random.randint(k2, (N,), 0, C, dtype=jnp.int32)
    targets = targets.at[:7].set(PAD_BYTE)  # a few ignored (padding) positions

    for red in ("mean", "sum", "none"):
        out = jax.block_until_ready(
            focal_loss(logits, targets, alpha=1.0, gamma=0.5, reduction=red))
        ref = _focal_loss_ref(logits, targets, alpha=1.0, gamma=0.5, reduction=red)
        assert jnp.allclose(out, ref, rtol=1e-5, atol=1e-5), (red, out, ref)

    # bf16 logits end-to-end (kernel consumes bf16 blocks; exp/logsumexp math in f32).
    logits_bf16 = logits.astype(jnp.bfloat16)
    out_bf = jax.block_until_ready(
        focal_loss(logits_bf16, targets, alpha=1.0, gamma=0.5, reduction="mean"))
    ref_bf = _focal_loss_ref(logits_bf16.astype(jnp.float32), targets,
                             alpha=1.0, gamma=0.5, reduction="mean")
    assert jnp.allclose(out_bf, ref_bf, rtol=1e-4, atol=1e-4), (out_bf, ref_bf)

    print("KERNEL_OK")
</pallas_src>

<mosaic_0001>
module attributes {stable_mosaic.version = 11 : i64} {
  func.func @_focal_partial_kernel(%arg0: i32, %arg1: memref<104x256xf32, #tpu.memory_space<vmem>>, %arg2: memref<104x1xi32, #tpu.memory_space<vmem>>, %arg3: memref<8x128xf32, #tpu.memory_space<vmem>>) attributes {dimension_semantics = [#tpu.dimension_semantics<parallel>], iteration_bounds = array<i64: 2>, scalar_prefetch = 0 : i64, scratch_operands = 0 : i64, tpu.core_type = #tpu.core_type<tc>, window_params = [{transform_indices = @transform_0, window_bounds = array<i64: 104, 256>}, {transform_indices = @transform_1, window_bounds = array<i64: 104, 1>}, {transform_indices = @transform_2, window_bounds = array<i64: 8, 128>}]} {
    %c0 = arith.constant 0 : index
    %c0_0 = arith.constant 0 : index
    %0 = vector.load %arg1[%c0, %c0_0] : memref<104x256xf32, #tpu.memory_space<vmem>>, vector<104x256xf32>
    %c0_1 = arith.constant 0 : index
    %c0_2 = arith.constant 0 : index
    %1 = vector.load %arg2[%c0_1, %c0_2] : memref<104x1xi32, #tpu.memory_space<vmem>>, vector<104x1xi32>
    %2 = tpu.iota {dimensions = array<i32: 1>} : vector<104x256xi32>
    %3 = vector.broadcast %1 : vector<104x1xi32> to vector<104x256xi32>
    %4 = arith.cmpi eq, %2, %3 : vector<104x256xi32>
    %cst = arith.constant 0.000000e+00 : f32
    %5 = vector.broadcast %cst : f32 to vector<104x256xf32>
    %6 = arith.select %4, %0, %5 : vector<104x256xi1>, vector<104x256xf32>
    %cst_3 = arith.constant dense<0.000000e+00> : vector<104xf32>
    %7 = vector.multi_reduction <add>, %6, %cst_3 [1] : vector<104x256xf32> to vector<104xf32>
    %8 = vector.shape_cast %7 : vector<104xf32> to vector<104x1xf32>
    %cst_4 = arith.constant dense<0xFF800000> : vector<104xf32>
    %9 = vector.multi_reduction <maximumf>, %0, %cst_4 [1] : vector<104x256xf32> to vector<104xf32>
    %10 = vector.shape_cast %9 : vector<104xf32> to vector<104x1xf32>
    %11 = vector.broadcast %10 : vector<104x1xf32> to vector<104x256xf32>
    %12 = arith.subf %0, %11 : vector<104x256xf32>
    %13 = math.exp %12 : vector<104x256xf32>
    %cst_5 = arith.constant dense<0.000000e+00> : vector<104xf32>
    %14 = vector.multi_reduction <add>, %13, %cst_5 [1] : vector<104x256xf32> to vector<104xf32>
    %15 = vector.shape_cast %14 : vector<104xf32> to vector<104x1xf32>
    %16 = math.log %15 : vector<104x1xf32>
    %17 = arith.addf %10, %16 : vector<104x1xf32>
    %c0_i32 = arith.constant 0 : i32
    %18 = vector.broadcast %c0_i32 : i32 to vector<104x1xi32>
    %19 = arith.cmpi ne, %1, %18 : vector<104x1xi32>
    %20 = arith.subf %17, %8 : vector<104x1xf32>
    %cst_6 = arith.constant 0.000000e+00 : f32
    %21 = vector.broadcast %cst_6 : f32 to vector<104x1xf32>
    %22 = arith.select %19, %20, %21 : vector<104x1xi1>, vector<104x1xf32>
    %cst_7 = arith.constant 0.000000e+00 : f32
    %23 = vector.broadcast %cst_7 : f32 to vector<104x1xf32>
    %24 = arith.subf %23, %22 : vector<104x1xf32>
    %25 = math.exp %24 : vector<104x1xf32>
    %cst_8 = arith.constant 1.000000e+00 : f32
    %26 = vector.broadcast %cst_8 : f32 to vector<104x1xf32>
    %27 = arith.subf %26, %25 : vector<104x1xf32>
    %cst_9 = arith.constant 0.000000e+00 : f32
    %28 = vector.broadcast %cst_9 : f32 to vector<104x1xf32>
    %29 = arith.maximumf %27, %28 : vector<104x1xf32>
    %30 = math.sqrt %29 : vector<104x1xf32>
    %cst_10 = arith.constant 1.000000e+00 : f32
    %31 = vector.broadcast %cst_10 : f32 to vector<104x1xf32>
    %32 = arith.mulf %31, %30 : vector<104x1xf32>
    %33 = arith.mulf %32, %22 : vector<104x1xf32>
    %c104_i32 = arith.constant 104 : i32
    %34 = arith.muli %arg0, %c104_i32 : i32
    %35 = tpu.iota {dimensions = array<i32: 0>} : vector<104x1xi32>
    %36 = vector.broadcast %34 : i32 to vector<104x1xi32>
    %37 = arith.addi %36, %35 : vector<104x1xi32>
    %c200_i32 = arith.constant 200 : i32
    %38 = vector.broadcast %c200_i32 : i32 to vector<104x1xi32>
    %39 = arith.cmpi slt, %37, %38 : vector<104x1xi32>
    %cst_11 = arith.constant 0.000000e+00 : f32
    %40 = vector.broadcast %cst_11 : f32 to vector<104x1xf32>
    %41 = arith.select %39, %33, %40 : vector<104x1xi1>, vector<104x1xf32>
    %cst_12 = arith.constant dense<0.000000e+00> : vector<1xf32>
    %42 = vector.multi_reduction <add>, %41, %cst_12 [0] : vector<104x1xf32> to vector<1xf32>
    %43 = vector.shape_cast %42 : vector<1xf32> to vector<1x1xf32>
    %44 = vector.shape_cast %43 : vector<1x1xf32> to vector<1x1xf32>
    %45 = vector.broadcast %44 : vector<1x1xf32> to vector<8x128xf32>
    %c0_13 = arith.constant 0 : index
    %c0_14 = arith.constant 0 : index
    %46 = vector.load %arg3[%c0_13, %c0_14] : memref<8x128xf32, #tpu.memory_space<vmem>>, vector<8x128xf32>
    tpu.vector_store %arg3[%c0_13, %c0_14], %45 {strides = array<i32>} : memref<8x128xf32, #tpu.memory_space<vmem>>, vector<8x128xf32>,
    return
  }
  func.func @transform_0(%arg0: i32) -> (i32, i32) {
    %c0_i32 = arith.constant 0 : i32
    %c0_i32_0 = arith.constant 0 : i32
    return %arg0, %c0_i32 : i32, i32
  }
  func.func @transform_1(%arg0: i32) -> (i32, i32) {
    %c0_i32 = arith.constant 0 : i32
    %c0_i32_0 = arith.constant 0 : i32
    return %arg0, %c0_i32 : i32, i32
  }
  func.func @transform_2(%arg0: i32) -> (i32, i32) {
    %c0_i32 = arith.constant 0 : i32
    %c0_i32_0 = arith.constant 0 : i32
    return %arg0, %c0_i32 : i32, i32
  }
}

</mosaic_0001>

<llo_original>
// kernel: tpu_custom_call.1
$region0: #{tpu_custom_call.1}
  #allocation0 [shape = 'u32[]', space=smem, size = 0x4, offset = 0x4, fixed_abs, tag = 'smem constant byte address 0x4 - core index']
  #allocation1 [shape = 'u32[144,128]{1,0:T(1,128)}', space=vmem, size = 0x12000, scoped, tag = 'internal scratch']
  %s0 = inlined_call_operand.hbm [shape: f32[200,256], index: 0, kind: input, shape index: {}]
  %s1 = inlined_call_operand.vmem [shape: s32[200,1], index: 1, kind: input, shape index: {}]
  %s2 = inlined_call_operand.hbm [shape: f32[16,128], index: 2, kind: output, shape index: {}]
  %s3 = sld [smem:[#allocation0]]
  $region45: #{tpu_custom_call.1} parent=0
    _
  %s5 = ssub.s32 1, %s3
  %s6 = scalar_select 0, %s5, %s3
  $region1: #{tpu_custom_call.1} parent=0
    #allocation2 [shape = 'u8[212992]{0}', space=vmem, size = 0x34000, scoped, tag = 'input window, operand 0']
    #allocation3 [shape = 's32[2]{0}', space=sflag, size = 0x8, scoped, tag = 'scoped memory for tpu_custom_call.1']
    #allocation4 [shape = 's32[2]{0}', space=sflag, size = 0x8, scoped, tag = 'scoped memory for tpu_custom_call.1']
    #allocation5 [shape = 'u8[8192]{0}', space=vmem, size = 0x2000, scoped, tag = 'output window, operand 0']
    %7 = vsyncpa [#allocation3], 0
    %s8 = scalar_lea.sflag [#allocation3], 1
    %9 = vsyncpa %s8, 0
    %10 = vsyncpa [#allocation4], 0
    %s11 = scalar_lea.sflag [#allocation4], 1
    %12 = vsyncpa %s11, 0
    loop: start=0, step=1, limit=4
    $region2: #{tpu_custom_call.1} parent=1 // loop_pre_header
      _
    $region3: #{tpu_custom_call.1} parent=1 // loop_header
      %s14 = sphi 0, %s18
      %p15 = scmp.ge.s32.totalorder %s14, 4
      %s24 = sphi 0, %s26
      %s27 = sphi 0, %s24
      %s28 = sphi 0, %s27
      %s44 = sphi 0, %s28
      %s50 = sphi 0, %s52
      %s53 = sphi 0, %s50
      %s54 = sphi 0, %s53
      %s70 = sphi 0, %s54
      %s76 = sphi 0, %s78
      %s79 = sphi 0, %s76
      %s80 = sphi 0, %s79
      %s96 = sphi 0, %s80
    $region4: #{tpu_custom_call.1} parent=1 // loop_header_branch
      %17 = sbr.rel (%p15) target = $region8
    $region5: #{tpu_custom_call.1} parent=1 // loop_body
      %s19 = ssub.s32 %s14, 1
      %s20 = ssub.s32 %s14, 2
      %s21 = sadd.s32 %s14, 1
      %s22 = ssub.s32 %s14, %s21
      %p23 = scmp.eq.s32.totalorder %s22, 0
      %s25 = sadd.s32 %s24, 1
      %s26 = scalar_select %p23, %s24, %s25
      %p29 = pneg %p23
      %p30 = scmp.eq.s32.totalorder %s14, 1
      %p31 = por %p29, %p30
      %p32 = scmp.ne.s32.totalorder %s24, %s27
      %p33 = scmp.eq.s32.totalorder %s14, 0
      %p34 = por %p32, %p33
      %p35 = scmp.ne.s32.totalorder %s24, %s27
      %p36 = scmp.eq.s32.totalorder %s19, 1
      %p37 = por %p35, %p36
      %p38 = scmp.ne.s32.totalorder %s27, %s28
      %p39 = scmp.eq.s32.totalorder %s19, 0
      %p40 = por %p38, %p39
      %p41 = scmp.ne.s32.totalorder %s27, %s28
      %p42 = scmp.eq.s32.totalorder %s20, 1
      %p43 = por %p41, %p42
      %p45 = scmp.ne.s32.totalorder %s28, %s44
      %p46 = scmp.eq.s32.totalorder %s20, 0
      %p47 = por %p45, %p46
      %s48 = ssub.s32 %s14, %s21
      %p49 = scmp.eq.s32.totalorder %s48, 0
      %s51 = sadd.s32 %s50, 1
      %s52 = scalar_select %p49, %s50, %s51
      %p55 = pneg %p49
      %p56 = scmp.eq.s32.totalorder %s14, 1
      %p57 = por %p55, %p56
      %p58 = scmp.ne.s32.totalorder %s50, %s53
      %p59 = scmp.eq.s32.totalorder %s14, 0
      %p60 = por %p58, %p59
      %p61 = scmp.ne.s32.totalorder %s50, %s53
      %p62 = scmp.eq.s32.totalorder %s19, 1
      %p63 = por %p61, %p62
      %p64 = scmp.ne.s32.totalorder %s53, %s54
      %p65 = scmp.eq.s32.totalorder %s19, 0
      %p66 = por %p64, %p65
      %p67 = scmp.ne.s32.totalorder %s53, %s54
      %p68 = scmp.eq.s32.totalorder %s20, 1
      %p69 = por %p67, %p68
      %p71 = scmp.ne.s32.totalorder %s54, %s70
      %p72 = scmp.eq.s32.totalorder %s20, 0
      %p73 = por %p71, %p72
      %s74 = ssub.s32 %s14, %s21
      %p75 = scmp.eq.s32.totalorder %s74, 0
      %s77 = sadd.s32 %s76, 1
      %s78 = scalar_select %p75, %s76, %s77
      %p81 = pneg %p75
      %p82 = scmp.eq.s32.totalorder %s14, 1
      %p83 = por %p81, %p82
      %p84 = scmp.ne.s32.totalorder %s76, %s79
      %p85 = scmp.eq.s32.totalorder %s14, 0
      %p86 = por %p84, %p85
      %p87 = scmp.ne.s32.totalorder %s76, %s79
      %p88 = scmp.eq.s32.totalorder %s19, 1
      %p89 = por %p87, %p88
      %p90 = scmp.ne.s32.totalorder %s79, %s80
      %p91 = scmp.eq.s32.totalorder %s19, 0
      %p92 = por %p90, %p91
      %p93 = scmp.ne.s32.totalorder %s79, %s80
      %p94 = scmp.eq.s32.totalorder %s20, 1
      %p95 = por %p93, %p94
      %p97 = scmp.ne.s32.totalorder %s80, %s96
      %p98 = scmp.eq.s32.totalorder %s20, 0
      %p99 = por %p97, %p98
      %p100 = scmp.le.s32.totalorder 1, %s14
      %p101 = scmp.lt.s32.totalorder %s14, 3
      %p102 = pnand %p100, %p101
      %p103 = pneg %p102
      // Predicated region
      $region9: #{tpu_custom_call.1} parent=5 // pred_check
        _
      $region10: #{tpu_custom_call.1} parent=5 // pred_check_branch
        %105 = sbr.rel (%p102) target = $region12
      $region11: #{tpu_custom_call.1} parent=5 // pred_region
        %s106 = ssub.s32 %s14, 1
      $region12: #{tpu_custom_call.1} parent=5 // pred_fallthru
        _
      %p107 = scmp.lt.s32.totalorder %s14, 2
      // Predicated region
      $region13: #{tpu_custom_call.1} parent=5 // pred_check
        %p108 = pneg %p107
      $region14: #{tpu_custom_call.1} parent=5 // pred_check_branch
        %110 = sbr.rel (%p108) target = $region16
      $region15: #{tpu_custom_call.1} parent=5 // pred_region
        // Predicated region
        $region17: #{tpu_custom_call.1} parent=15 // pred_check
          %p111 = pneg %p34
        $region18: #{tpu_custom_call.1} parent=15 // pred_check_branch
          %113 = sbr.rel (%p111) target = $region20
        $region19: #{tpu_custom_call.1} parent=15 // pred_region
          %s114 = sand.u32 %s24, 1
          %s115 = scalar_lea.sflag [#allocation3], %s114
          %s116 = sand.u32 %s24, 1
          %s117 = smul.addr %s116, 208
          %s118 = scalar_lea.vmem [#allocation2], %s117
          %s119 = smul.u32 13, %s14
          %s120 = ssub.s32 25, %s119
          %p121 = scmp.lt.s32.totalorder %s120, 13
          %s122 = scalar_select %p121, %s120, 13
          %s123 = smul.u32 128, %s122
          %s124 = smul.u32 %s123, 2
          %s126 = ssub.s32 3328, %s124
          %127 = vsyncadd %s115, %s126
          %p128 = scmp.ne.s32.totalorder 0, %s124
          %s129 = smul.addr %s119, 2
          %s130 = smul.addr %s129, 128
          %s131 = scalar_lea.hbm %s0, %s130
          %s132 = smul.u32 16, %s122
          %s133 = sshll.u32 %s118, 4
          %s134 = int_to_ptr.vmem [resolvable:$true] %s133
          %s135 = sshll.u32 %s132, 4
          %139 = dma.hbm_to_vmem [thread:$0]  (%p128), %s131, %s135, %s134, %s115, 256, 256, 16
        $region20: #{tpu_custom_call.1} parent=15 // pred_fallthru
          _
        // Predicated region
        $region21: #{tpu_custom_call.1} parent=15 // pred_check
          %p140 = pneg %p60
        $region22: #{tpu_custom_call.1} parent=15 // pred_check_branch
          %142 = sbr.rel (%p140) target = $region24
        $region23: #{tpu_custom_call.1} parent=15 // pred_region
          %s143 = smul.u32 13, %s14
          %s144 = ssub.s32 25, %s143
          %p145 = scmp.lt.s32.totalorder %s144, 13
          %s146 = scalar_select %p145, %s144, 13
          %s147 = smul.u32 128, %s146
          %p148 = scmp.lt.s32.totalorder %s143, 24
          %s149 = scalar_select %p148, %s143, 24
          %s150 = smul.addr %s149, 8
          %s151 = scalar_lea.vmem %s1, %s150
          %s152 = smul.u32 13, %s14
          %s153 = ssub.s32 25, %s152
          %p154 = scmp.lt.s32.totalorder %s153, 13
          %s155 = scalar_select %p154, %s153, 13
          %s156 = smul.u32 128, %s155
        $region24: #{tpu_custom_call.1} parent=15 // pred_fallthru
          _
      $region16: #{tpu_custom_call.1} parent=5 // pred_fallthru
        _
      %p157 = scmp.le.s32.totalorder 1, %s14
      %p158 = scmp.lt.s32.totalorder %s14, 3
      %p159 = pnand %p157, %p158
      %p160 = pneg %p159
      // Predicated region
      $region25: #{tpu_custom_call.1} parent=5 // pred_check
        _
      $region26: #{tpu_custom_call.1} parent=5 // pred_check_branch
        %162 = sbr.rel (%p159) target = $region28
      $region27: #{tpu_custom_call.1} parent=5 // pred_region
        %s163 = ssub.s32 %s14, 1
        %s164 = sand.u32 %s27, 1
        %s165 = scalar_lea.sflag [#allocation3], %s164
        %s166 = sand.u32 %s27, 1
        %s167 = smul.addr %s166, 208
        %s168 = scalar_lea.vmem [#allocation2], %s167
        // Predicated region
        $region29: #{tpu_custom_call.1} parent=27 // pred_check
          %p169 = pneg %p40
        $region30: #{tpu_custom_call.1} parent=27 // pred_check_branch
          %171 = sbr.rel (%p169) target = $region32
        $region31: #{tpu_custom_call.1} parent=27 // pred_region
          %172 = dma.done %s165, 3328
        $region32: #{tpu_custom_call.1} parent=27 // pred_fallthru
          _
        %s173 = sand.u32 %s27, 1
        %s174 = scalar_lea.sflag [#allocation3], %s173
        %s175 = sand.u32 %s27, 1
        %s176 = smul.addr %s175, 208
        %s177 = scalar_lea.vmem [#allocation2], %s176
        %p178 = pneg %p40
        %p179 = pneg %p37
        %s180 = smul.u32 13, %s19
        %s181 = ssub.s32 25, %s180
        %p182 = scmp.lt.s32.totalorder %s181, 13
        %s183 = scalar_select %p182, %s181, 13
        %s184 = smul.u32 128, %s183
        %p185 = scmp.lt.s32.totalorder %s180, 24
        %s186 = scalar_select %p185, %s180, 24
        %s187 = smul.addr %s186, 8
        %s188 = scalar_lea.vmem %s1, %s187
        %p189 = pneg %p66
        %p190 = pneg %p63
        %p191 = pneg %p92
        %p192 = pneg %p89
        %s193 = sand.u32 %s79, 1
        %s194 = scalar_lea.sflag [#allocation4], %s193
        %s195 = sand.u32 %s79, 1
        %s196 = smul.addr %s195, 8
        %s197 = scalar_lea.vmem [#allocation5], %s196
        %s198 = smul.u32 13, %s19
        %s199 = ssub.s32 25, %s198
        %p200 = scmp.lt.s32.totalorder %s199, 13
        %s201 = scalar_select %p200, %s199, 13
        %s202 = smul.u32 128, %s201
        %s203 = smul.u32 %s202, 2
        %s204 = smul.u32 13, %s19
        %s205 = ssub.s32 25, %s204
        %p206 = scmp.lt.s32.totalorder %s205, 13
        %s207 = scalar_select %p206, %s205, 13
        %s208 = smul.u32 128, %s207
        %p209 = scmp.lt.s32.totalorder %s204, 24
        %s210 = scalar_select %p209, %s204, 24
        %s211 = smul.addr %s210, 8
        %s212 = scalar_lea.vmem %s1, %s211
        %s213 = smul.u32 13, %s19
        %s214 = ssub.s32 25, %s213
        %p215 = scmp.lt.s32.totalorder %s214, 13
        %s216 = scalar_select %p215, %s214, 13
        %s217 = smul.u32 128, %s216
        %v218 = vld [vmem:[%s168] sm:$0xff]
        %v219 = vld [vmem:[%s168 + $0x8] sm:$0xff]
        %v220 = vld [vmem:[%s168 + $0x10] sm:$0xff]
        %v221 = vld [vmem:[%s168 + $0x18] sm:$0xff]
        %v222 = vld [vmem:[%s168 + $0x20] sm:$0xff]
        %v223 = vld [vmem:[%s168 + $0x28] sm:$0xff]
        %v224 = vld [vmem:[%s168 + $0x30] sm:$0xff]
        %v225 = vld [vmem:[%s168 + $0x38] sm:$0xff]
        %v226 = vld [vmem:[%s168 + $0x40] sm:$0xff]
        %v227 = vld [vmem:[%s168 + $0x48] sm:$0xff]
        %v228 = vld [vmem:[%s168 + $0x50] sm:$0xff]
        %v229 = vld [vmem:[%s168 + $0x58] sm:$0xff]
        %v230 = vld [vmem:[%s168 + $0x60] sm:$0xff]
        %v231 = vld [vmem:[%s168 + $0x68] sm:$0xff]
        %v232 = vld [vmem:[%s168 + $0x70] sm:$0xff]
        %v233 = vld [vmem:[%s168 + $0x78] sm:$0xff]
        %v234 = vld [vmem:[%s168 + $0x80] sm:$0xff]
        %v235 = vld [vmem:[%s168 + $0x88] sm:$0xff]
        %v236 = vld [vmem:[%s168 + $0x90] sm:$0xff]
        %v237 = vld [vmem:[%s168 + $0x98] sm:$0xff]
        %v238 = vld [vmem:[%s168 + $0xa0] sm:$0xff]
        %v239 = vld [vmem:[%s168 + $0xa8] sm:$0xff]
        %v240 = vld [vmem:[%s168 + $0xb0] sm:$0xff]
        %v241 = vld [vmem:[%s168 + $0xb8] sm:$0xff]
        %v242 = vld [vmem:[%s168 + $0xc0] sm:$0xff]
        %v243 = vld [vmem:[%s168 + $0xc8] sm:$0xff]
        %v244 = vld [vmem:[%s212] sm:$0xff]
        %v245 = vld [vmem:[%s212 + $0x8] sm:$0xff]
        %v246 = vld [vmem:[%s212 + $0x10] sm:$0xff]
        %v247 = vld [vmem:[%s212 + $0x18] sm:$0xff]
        %v248 = vld [vmem:[%s212 + $0x20] sm:$0xff]
        %v249 = vld [vmem:[%s212 + $0x28] sm:$0xff]
        %v250 = vld [vmem:[%s212 + $0x30] sm:$0xff]
        %v251 = vld [vmem:[%s212 + $0x38] sm:$0xff]
        %v252 = vld [vmem:[%s212 + $0x40] sm:$0xff]
        %v253 = vld [vmem:[%s212 + $0x48] sm:$0xff]
        %v254 = vld [vmem:[%s212 + $0x50] sm:$0xff]
        %v255 = vld [vmem:[%s212 + $0x58] sm:$0xff]
        %v256 = vld [vmem:[%s212 + $0x60] sm:$0xff]
        %v257 = vlaneseq
        %v258 = vand.u32 %v257, 127
        %v259 = vadd.s32 %v258, 128
        %260 = vset.pattern.permute.xlu0 0
        %261 = vperm.xlu0 %260, %v244
        %v262 = vpop.permute.xlu0 %261
        %263 = vset.pattern.permute.xlu0 0
        %264 = vperm.xlu0 %263, %v245
        %v265 = vpop.permute.xlu0 %264
        %266 = vset.pattern.permute.xlu0 0
        %267 = vperm.xlu0 %266, %v246
        %v268 = vpop.permute.xlu0 %267
        %269 = vset.pattern.permute.xlu0 0
        %270 = vperm.xlu0 %269, %v247
        %v271 = vpop.permute.xlu0 %270
        %272 = vset.pattern.permute.xlu0 0
        %273 = vperm.xlu0 %272, %v248
        %v274 = vpop.permute.xlu0 %273
        %275 = vset.pattern.permute.xlu0 0
        %276 = vperm.xlu0 %275, %v249
        %v277 = vpop.permute.xlu0 %276
        %278 = vset.pattern.permute.xlu0 0
        %279 = vperm.xlu0 %278, %v250
        %v280 = vpop.permute.xlu0 %279
        %281 = vset.pattern.permute.xlu0 0
        %282 = vperm.xlu0 %281, %v251
        %v283 = vpop.permute.xlu0 %282
        %284 = vset.pattern.permute.xlu0 0
        %285 = vperm.xlu0 %284, %v252
        %v286 = vpop.permute.xlu0 %285
        %287 = vset.pattern.permute.xlu0 0
        %288 = vperm.xlu0 %287, %v253
        %v289 = vpop.permute.xlu0 %288
        %290 = vset.pattern.permute.xlu0 0
        %291 = vperm.xlu0 %290, %v254
        %v292 = vpop.permute.xlu0 %291
        %293 = vset.pattern.permute.xlu0 0
        %294 = vperm.xlu0 %293, %v255
        %v295 = vpop.permute.xlu0 %294
        %296 = vset.pattern.permute.xlu0 0
        %297 = vperm.xlu0 %296, %v256
        %v298 = vpop.permute.xlu0 %297
        %vm299 = vcmp.eq.s32.totalorder %v258, %v262
        %vm300 = vcmp.eq.s32.totalorder %v259, %v262
        %vm301 = vcmp.eq.s32.totalorder %v258, %v265
        %vm302 = vcmp.eq.s32.totalorder %v259, %v265
        %vm303 = vcmp.eq.s32.totalorder %v258, %v268
        %vm304 = vcmp.eq.s32.totalorder %v259, %v268
        %vm305 = vcmp.eq.s32.totalorder %v258, %v271
        %vm306 = vcmp.eq.s32.totalorder %v259, %v271
        %vm307 = vcmp.eq.s32.totalorder %v258, %v274
        %vm308 = vcmp.eq.s32.totalorder %v259, %v274
        %vm309 = vcmp.eq.s32.totalorder %v258, %v277
        %vm310 = vcmp.eq.s32.totalorder %v259, %v277
        %vm311 = vcmp.eq.s32.totalorder %v258, %v280
        %vm312 = vcmp.eq.s32.totalorder %v259, %v280
        %vm313 = vcmp.eq.s32.totalorder %v258, %v283
        %vm314 = vcmp.eq.s32.totalorder %v259, %v283
        %vm315 = vcmp.eq.s32.totalorder %v258, %v286
        %vm316 = vcmp.eq.s32.totalorder %v259, %v286
        %vm317 = vcmp.eq.s32.totalorder %v258, %v289
        %vm318 = vcmp.eq.s32.totalorder %v259, %v289
        %vm319 = vcmp.eq.s32.totalorder %v258, %v292
        %vm320 = vcmp.eq.s32.totalorder %v259, %v292
        %vm321 = vcmp.eq.s32.totalorder %v258, %v295
        %vm322 = vcmp.eq.s32.totalorder %v259, %v295
        %vm323 = vcmp.eq.s32.totalorder %v258, %v298
        %vm324 = vcmp.eq.s32.totalorder %v259, %v298
        %v325 = vsel %vm299, %v218, 0.0
        %v326 = vsel %vm300, %v219, 0.0
        %v327 = vsel %vm301, %v220, 0.0
        %v328 = vsel %vm302, %v221, 0.0
        %v329 = vsel %vm303, %v222, 0.0
        %v330 = vsel %vm304, %v223, 0.0
        %v331 = vsel %vm305, %v224, 0.0
        %v332 = vsel %vm306, %v225, 0.0
        %v333 = vsel %vm307, %v226, 0.0
        %v334 = vsel %vm308, %v227, 0.0
        %v335 = vsel %vm309, %v228, 0.0
        %v336 = vsel %vm310, %v229, 0.0
        %v337 = vsel %vm311, %v230, 0.0
        %v338 = vsel %vm312, %v231, 0.0
        %v339 = vsel %vm313, %v232, 0.0
        %v340 = vsel %vm314, %v233, 0.0
        %v341 = vsel %vm315, %v234, 0.0
        %v342 = vsel %vm316, %v235, 0.0
        %v343 = vsel %vm317, %v236, 0.0
        %v344 = vsel %vm318, %v237, 0.0
        %v345 = vsel %vm319, %v238, 0.0
        %v346 = vsel %vm320, %v239, 0.0
        %v347 = vsel %vm321, %v240, 0.0
        %v348 = vsel %vm322, %v241, 0.0
        %v349 = vsel %vm323, %v242, 0.0
        %v350 = vsel %vm324, %v243, 0.0
        %v351 = vadd.f32 %v325, %v326
        %352 = vadd.xlane.f32.xlu0 %v351
        %v353 = vpop.xlane.xlu0 %352
        %v354 = vadd.f32 %v327, %v328
        %355 = vadd.xlane.f32.xlu0 %v354
        %v356 = vpop.xlane.xlu0 %355
        %v357 = vadd.f32 %v329, %v330
        %358 = vadd.xlane.f32.xlu0 %v357
        %v359 = vpop.xlane.xlu0 %358
        %v360 = vadd.f32 %v331, %v332
        %361 = vadd.xlane.f32.xlu0 %v360
        %v362 = vpop.xlane.xlu0 %361
        %v363 = vadd.f32 %v333, %v334
        %364 = vadd.xlane.f32.xlu0 %v363
        %v365 = vpop.xlane.xlu0 %364
        %v366 = vadd.f32 %v335, %v336
        %367 = vadd.xlane.f32.xlu0 %v366
        %v368 = vpop.xlane.xlu0 %367
        %v369 = vadd.f32 %v337, %v338
        %370 = vadd.xlane.f32.xlu0 %v369
        %v371 = vpop.xlane.xlu0 %370
        %v372 = vadd.f32 %v339, %v340
        %373 = vadd.xlane.f32.xlu0 %v372
        %v374 = vpop.xlane.xlu0 %373
        %v375 = vadd.f32 %v341, %v342
        %376 = vadd.xlane.f32.xlu0 %v375
        %v377 = vpop.xlane.xlu0 %376
        %v378 = vadd.f32 %v343, %v344
        %379 = vadd.xlane.f32.xlu0 %v378
        %v380 = vpop.xlane.xlu0 %379
        %v381 = vadd.f32 %v345, %v346
        %382 = vadd.xlane.f32.xlu0 %v381
        %v383 = vpop.xlane.xlu0 %382
        %v384 = vadd.f32 %v347, %v348
        %385 = vadd.xlane.f32.xlu0 %v384
        %v386 = vpop.xlane.xlu0 %385
        %v387 = vadd.f32 %v349, %v350
        %388 = vadd.xlane.f32.xlu0 %v387
        %v389 = vpop.xlane.xlu0 %388
        %v390 = vmax.f32 %v218, %v219
        %391 = vmax.xlane.f32.xlu0 %v390
        %v392 = vpop.xlane.xlu0 %391
        %v393 = vmax.f32 %v220, %v221
        %394 = vmax.xlane.f32.xlu0 %v393
        %v395 = vpop.xlane.xlu0 %394
        %v396 = vmax.f32 %v222, %v223
        %397 = vmax.xlane.f32.xlu0 %v396
        %v398 = vpop.xlane.xlu0 %397
        %v399 = vmax.f32 %v224, %v225
        %400 = vmax.xlane.f32.xlu0 %v399
        %v401 = vpop.xlane.xlu0 %400
        %v402 = vmax.f32 %v226, %v227
        %403 = vmax.xlane.f32.xlu0 %v402
        %v404 = vpop.xlane.xlu0 %403
        %v405 = vmax.f32 %v228, %v229
        %406 = vmax.xlane.f32.xlu0 %v405
        %v407 = vpop.xlane.xlu0 %406
        %v408 = vmax.f32 %v230, %v231
        %409 = vmax.xlane.f32.xlu0 %v408
        %v410 = vpop.xlane.xlu0 %409
        %v411 = vmax.f32 %v232, %v233
        %412 = vmax.xlane.f32.xlu0 %v411
        %v413 = vpop.xlane.xlu0 %412
        %v414 = vmax.f32 %v234, %v235
        %415 = vmax.xlane.f32.xlu0 %v414
        %v416 = vpop.xlane.xlu0 %415
        %v417 = vmax.f32 %v236, %v237
        %418 = vmax.xlane.f32.xlu0 %v417
        %v419 = vpop.xlane.xlu0 %418
        %v420 = vmax.f32 %v238, %v239
        %421 = vmax.xlane.f32.xlu0 %v420
        %v422 = vpop.xlane.xlu0 %421
        %v423 = vmax.f32 %v240, %v241
        %424 = vmax.xlane.f32.xlu0 %v423
        %v425 = vpop.xlane.xlu0 %424
        %v426 = vmax.f32 %v242, %v243
        %427 = vmax.xlane.f32.xlu0 %v426
        %v428 = vpop.xlane.xlu0 %427
        %v429 = vsub.f32 %v218, %v392
        %v430 = vsub.f32 %v219, %v392
        %v431 = vsub.f32 %v220, %v395
        %v432 = vsub.f32 %v221, %v395
        %v433 = vsub.f32 %v222, %v398
        %v434 = vsub.f32 %v223, %v398
        %v435 = vsub.f32 %v224, %v401
        %v436 = vsub.f32 %v225, %v401
        %v437 = vsub.f32 %v226, %v404
        %v438 = vsub.f32 %v227, %v404
        %v439 = vsub.f32 %v228, %v407
        %v440 = vsub.f32 %v229, %v407
        %v441 = vsub.f32 %v230, %v410
        %v442 = vsub.f32 %v231, %v410
        %v443 = vsub.f32 %v232, %v413
        %v444 = vsub.f32 %v233, %v413
        %v445 = vsub.f32 %v234, %v416
        %v446 = vsub.f32 %v235, %v416
        %v447 = vsub.f32 %v236, %v419
        %v448 = vsub.f32 %v237, %v419
        %v449 = vsub.f32 %v238, %v422
        %v450 = vsub.f32 %v239, %v422
        %v451 = vsub.f32 %v240, %v425
        %v452 = vsub.f32 %v241, %v425
        %v453 = vsub.f32 %v242, %v428
        %v454 = vsub.f32 %v243, %v428
        %v455 = vmul.f32 %v429, 1.442695
        %v456 = vpow.pop %v455
        %v457 = vmul.f32 %v430, 1.442695
        %v458 = vpow.pop %v457
        %v459 = vmul.f32 %v431, 1.442695
        %v460 = vpow.pop %v459
        %v461 = vmul.f32 %v432, 1.442695
        %v462 = vpow.pop %v461
        %v463 = vmul.f32 %v433, 1.442695
        %v464 = vpow.pop %v463
        %v465 = vmul.f32 %v434, 1.442695
        %v466 = vpow.pop %v465
        %v467 = vmul.f32 %v435, 1.442695
        %v468 = vpow.pop %v467
        %v469 = vmul.f32 %v436, 1.442695
        %v470 = vpow.pop %v469
        %v471 = vmul.f32 %v437, 1.442695
        %v472 = vpow.pop %v471
        %v473 = vmul.f32 %v438, 1.442695
        %v474 = vpow.pop %v473
        %v475 = vmul.f32 %v439, 1.442695
        %v476 = vpow.pop %v475
        %v477 = vmul.f32 %v440, 1.442695
        %v478 = vpow.pop %v477
        %v479 = vmul.f32 %v441, 1.442695
        %v480 = vpow.pop %v479
        %v481 = vmul.f32 %v442, 1.442695
        %v482 = vpow.pop %v481
        %v483 = vmul.f32 %v443, 1.442695
        %v484 = vpow.pop %v483
        %v485 = vmul.f32 %v444, 1.442695
        %v486 = vpow.pop %v485
        %v487 = vmul.f32 %v445, 1.442695
        %v488 = vpow.pop %v487
        %v489 = vmul.f32 %v446, 1.442695
        %v490 = vpow.pop %v489
        %v491 = vmul.f32 %v447, 1.442695
        %v492 = vpow.pop %v491
        %v493 = vmul.f32 %v448, 1.442695
        %v494 = vpow.pop %v493
        %v495 = vmul.f32 %v449, 1.442695
        %v496 = vpow.pop %v495
        %v497 = vmul.f32 %v450, 1.442695
        %v498 = vpow.pop %v497
        %v499 = vmul.f32 %v451, 1.442695
        %v500 = vpow.pop %v499
        %v501 = vmul.f32 %v452, 1.442695
        %v502 = vpow.pop %v501
        %v503 = vmul.f32 %v453, 1.442695
        %v504 = vpow.pop %v503
        %v505 = vmul.f32 %v454, 1.442695
        %v506 = vpow.pop %v505
        %v507 = vadd.f32 %v456, %v458
        %508 = vadd.xlane.f32.xlu0 %v507
        %v509 = vpop.xlane.xlu0 %508
        %v510 = vadd.f32 %v460, %v462
        %511 = vadd.xlane.f32.xlu0 %v510
        %v512 = vpop.xlane.xlu0 %511
        %v513 = vadd.f32 %v464, %v466
        %514 = vadd.xlane.f32.xlu0 %v513
        %v515 = vpop.xlane.xlu0 %514
        %v516 = vadd.f32 %v468, %v470
        %517 = vadd.xlane.f32.xlu0 %v516
        %v518 = vpop.xlane.xlu0 %517
        %v519 = vadd.f32 %v472, %v474
        %520 = vadd.xlane.f32.xlu0 %v519
        %v521 = vpop.xlane.xlu0 %520
        %v522 = vadd.f32 %v476, %v478
        %523 = vadd.xlane.f32.xlu0 %v522
        %v524 = vpop.xlane.xlu0 %523
        %v525 = vadd.f32 %v480, %v482
        %526 = vadd.xlane.f32.xlu0 %v525
        %v527 = vpop.xlane.xlu0 %526
        %v528 = vadd.f32 %v484, %v486
        %529 = vadd.xlane.f32.xlu0 %v528
        %v530 = vpop.xlane.xlu0 %529
        %v531 = vadd.f32 %v488, %v490
        %532 = vadd.xlane.f32.xlu0 %v531
        %v533 = vpop.xlane.xlu0 %532
        %v534 = vadd.f32 %v492, %v494
        %535 = vadd.xlane.f32.xlu0 %v534
        %v536 = vpop.xlane.xlu0 %535
        %v537 = vadd.f32 %v496, %v498
        %538 = vadd.xlane.f32.xlu0 %v537
        %v539 = vpop.xlane.xlu0 %538
        %v540 = vadd.f32 %v500, %v502
        %541 = vadd.xlane.f32.xlu0 %v540
        %v542 = vpop.xlane.xlu0 %541
        %v543 = vadd.f32 %v504, %v506
        %544 = vadd.xlane.f32.xlu0 %v543
        %v545 = vpop.xlane.xlu0 %544
        %v546 = vlog2.pop %v509
        %v547 = vmul.f32 %v546, 0.6931472
        %v548 = vlog2.pop %v512
        %v549 = vmul.f32 %v548, 0.6931472
        %v550 = vlog2.pop %v515
        %v551 = vmul.f32 %v550, 0.6931472
        %v552 = vlog2.pop %v518
        %v553 = vmul.f32 %v552, 0.6931472
        %v554 = vlog2.pop %v521
        %v555 = vmul.f32 %v554, 0.6931472
        %v556 = vlog2.pop %v524
        %v557 = vmul.f32 %v556, 0.6931472
        %v558 = vlog2.pop %v527
        %v559 = vmul.f32 %v558, 0.6931472
        %v560 = vlog2.pop %v530
        %v561 = vmul.f32 %v560, 0.6931472
        %v562 = vlog2.pop %v533
        %v563 = vmul.f32 %v562, 0.6931472
        %v564 = vlog2.pop %v536
        %v565 = vmul.f32 %v564, 0.6931472
        %v566 = vlog2.pop %v539
        %v567 = vmul.f32 %v566, 0.6931472
        %v568 = vlog2.pop %v542
        %v569 = vmul.f32 %v568, 0.6931472
        %v570 = vlog2.pop %v545
        %v571 = vmul.f32 %v570, 0.6931472
        %v572 = vadd.f32 %v392, %v547
        %v573 = vadd.f32 %v395, %v549
        %v574 = vadd.f32 %v398, %v551
        %v575 = vadd.f32 %v401, %v553
        %v576 = vadd.f32 %v404, %v555
        %v577 = vadd.f32 %v407, %v557
        %v578 = vadd.f32 %v410, %v559
        %v579 = vadd.f32 %v413, %v561
        %v580 = vadd.f32 %v416, %v563
        %v581 = vadd.f32 %v419, %v565
        %v582 = vadd.f32 %v422, %v567
        %v583 = vadd.f32 %v425, %v569
        %v584 = vadd.f32 %v428, %v571
        %vm585 = vcmp.ne.s32.totalorder %v244, 0
        %vm586 = vcmp.ne.s32.totalorder %v245, 0
        %vm587 = vcmp.ne.s32.totalorder %v246, 0
        %vm588 = vcmp.ne.s32.totalorder %v247, 0
        %vm589 = vcmp.ne.s32.totalorder %v248, 0
        %vm590 = vcmp.ne.s32.totalorder %v249, 0
        %vm591 = vcmp.ne.s32.totalorder %v250, 0
        %vm592 = vcmp.ne.s32.totalorder %v251, 0
        %vm593 = vcmp.ne.s32.totalorder %v252, 0
        %vm594 = vcmp.ne.s32.totalorder %v253, 0
        %vm595 = vcmp.ne.s32.totalorder %v254, 0
        %vm596 = vcmp.ne.s32.totalorder %v255, 0
        %vm597 = vcmp.ne.s32.totalorder %v256, 0
        %v598 = vsub.f32 %v572, %v353
        %v599 = vsub.f32 %v573, %v356
        %v600 = vsub.f32 %v574, %v359
        %v601 = vsub.f32 %v575, %v362
        %v602 = vsub.f32 %v576, %v365
        %v603 = vsub.f32 %v577, %v368
        %v604 = vsub.f32 %v578, %v371
        %v605 = vsub.f32 %v579, %v374
        %v606 = vsub.f32 %v580, %v377
        %v607 = vsub.f32 %v581, %v380
        %v608 = vsub.f32 %v582, %v383
        %v609 = vsub.f32 %v583, %v386
        %v610 = vsub.f32 %v584, %v389
        %v611 = vsel %vm585, %v598, 0.0
        %v612 = vsel %vm586, %v599, 0.0
        %v613 = vsel %vm587, %v600, 0.0
        %v614 = vsel %vm588, %v601, 0.0
        %v615 = vsel %vm589, %v602, 0.0
        %v616 = vsel %vm590, %v603, 0.0
        %v617 = vsel %vm591, %v604, 0.0
        %v618 = vsel %vm592, %v605, 0.0
        %v619 = vsel %vm593, %v606, 0.0
        %v620 = vsel %vm594, %v607, 0.0
        %v621 = vsel %vm595, %v608, 0.0
        %v622 = vsel %vm596, %v609, 0.0
        %v623 = vsel %vm597, %v610, 0.0
        %v624 = vsub.f32 0.0, %v611
        %v625 = vsub.f32 0.0, %v612
        %v626 = vsub.f32 0.0, %v613
        %v627 = vsub.f32 0.0, %v614
        %v628 = vsub.f32 0.0, %v615
        %v629 = vsub.f32 0.0, %v616
        %v630 = vsub.f32 0.0, %v617
        %v631 = vsub.f32 0.0, %v618
        %v632 = vsub.f32 0.0, %v619
        %v633 = vsub.f32 0.0, %v620
        %v634 = vsub.f32 0.0, %v621
        %v635 = vsub.f32 0.0, %v622
        %v636 = vsub.f32 0.0, %v623
        %v637 = vmul.f32 %v624, 1.442695
        %v638 = vpow.pop %v637
        %v639 = vmul.f32 %v625, 1.442695
        %v640 = vpow.pop %v639
        %v641 = vmul.f32 %v626, 1.442695
        %v642 = vpow.pop %v641
        %v643 = vmul.f32 %v627, 1.442695
        %v644 = vpow.pop %v643
        %v645 = vmul.f32 %v628, 1.442695
        %v646 = vpow.pop %v645
        %v647 = vmul.f32 %v629, 1.442695
        %v648 = vpow.pop %v647
        %v649 = vmul.f32 %v630, 1.442695
        %v650 = vpow.pop %v649
        %v651 = vmul.f32 %v631, 1.442695
        %v652 = vpow.pop %v651
        %v653 = vmul.f32 %v632, 1.442695
        %v654 = vpow.pop %v653
        %v655 = vmul.f32 %v633, 1.442695
        %v656 = vpow.pop %v655
        %v657 = vmul.f32 %v634, 1.442695
        %v658 = vpow.pop %v657
        %v659 = vmul.f32 %v635, 1.442695
        %v660 = vpow.pop %v659
        %v661 = vmul.f32 %v636, 1.442695
        %v662 = vpow.pop %v661
        %v663 = vsub.f32 1.0, %v638
        %v664 = vsub.f32 1.0, %v640
        %v665 = vsub.f32 1.0, %v642
        %v666 = vsub.f32 1.0, %v644
        %v667 = vsub.f32 1.0, %v646
        %v668 = vsub.f32 1.0, %v648
        %v669 = vsub.f32 1.0, %v650
        %v670 = vsub.f32 1.0, %v652
        %v671 = vsub.f32 1.0, %v654
        %v672 = vsub.f32 1.0, %v656
        %v673 = vsub.f32 1.0, %v658
        %v674 = vsub.f32 1.0, %v660
        %v675 = vsub.f32 1.0, %v662
        %v676 = vmax.f32 %v663, 0.0
        %v677 = vmax.f32 %v664, 0.0
        %v678 = vmax.f32 %v665, 0.0
        %v679 = vmax.f32 %v666, 0.0
        %v680 = vmax.f32 %v667, 0.0
        %v681 = vmax.f32 %v668, 0.0
        %v682 = vmax.f32 %v669, 0.0
        %v683 = vmax.f32 %v670, 0.0
        %v684 = vmax.f32 %v671, 0.0
        %v685 = vmax.f32 %v672, 0.0
        %v686 = vmax.f32 %v673, 0.0
        %v687 = vmax.f32 %v674, 0.0
        %v688 = vmax.f32 %v675, 0.0
        %v689 = vrsqrt.pop %v676
        %v690 = vmul.f32 %v676, %v689
        %vm691 = vcmp.eq.f32.partialorder %v676, inf
        %v692 = vsel %vm691, %v676, %v690
        %vm693 = vcmp.eq.f32.partialorder %v676, 0.0
        %v694 = vand.u32 %v676, 2147483648
        %v695 = vsel %vm693, %v694, %v692
        %v696 = vrsqrt.pop %v677
        %v697 = vmul.f32 %v677, %v696
        %vm698 = vcmp.eq.f32.partialorder %v677, inf
        %v699 = vsel %vm698, %v677, %v697
        %vm700 = vcmp.eq.f32.partialorder %v677, 0.0
        %v701 = vand.u32 %v677, 2147483648
        %v702 = vsel %vm700, %v701, %v699
        %v703 = vrsqrt.pop %v678
        %v704 = vmul.f32 %v678, %v703
        %vm705 = vcmp.eq.f32.partialorder %v678, inf
        %v706 = vsel %vm705, %v678, %v704
        %vm707 = vcmp.eq.f32.partialorder %v678, 0.0
        %v708 = vand.u32 %v678, 2147483648
        %v709 = vsel %vm707, %v708, %v706
        %v710 = vrsqrt.pop %v679
        %v711 = vmul.f32 %v679, %v710
        %vm712 = vcmp.eq.f32.partialorder %v679, inf
        %v713 = vsel %vm712, %v679, %v711
        %vm714 = vcmp.eq.f32.partialorder %v679, 0.0
        %v715 = vand.u32 %v679, 2147483648
        %v716 = vsel %vm714, %v715, %v713
        %v717 = vrsqrt.pop %v680
        %v718 = vmul.f32 %v680, %v717
        %vm719 = vcmp.eq.f32.partialorder %v680, inf
        %v720 = vsel %vm719, %v680, %v718
        %vm721 = vcmp.eq.f32.partialorder %v680, 0.0
        %v722 = vand.u32 %v680, 2147483648
        %v723 = vsel %vm721, %v722, %v720
        %v724 = vrsqrt.pop %v681
        %v725 = vmul.f32 %v681, %v724
        %vm726 = vcmp.eq.f32.partialorder %v681, inf
        %v727 = vsel %vm726, %v681, %v725
        %vm728 = vcmp.eq.f32.partialorder %v681, 0.0
        %v729 = vand.u32 %v681, 2147483648
        %v730 = vsel %vm728, %v729, %v727
        %v731 = vrsqrt.pop %v682
        %v732 = vmul.f32 %v682, %v731
        %vm733 = vcmp.eq.f32.partialorder %v682, inf
        %v734 = vsel %vm733, %v682, %v732
        %vm735 = vcmp.eq.f32.partialorder %v682, 0.0
        %v736 = vand.u32 %v682, 2147483648
        %v737 = vsel %vm735, %v736, %v734
        %v738 = vrsqrt.pop %v683
        %v739 = vmul.f32 %v683, %v738
        %vm740 = vcmp.eq.f32.partialorder %v683, inf
        %v741 = vsel %vm740, %v683, %v739
        %vm742 = vcmp.eq.f32.partialorder %v683, 0.0
        %v743 = vand.u32 %v683, 2147483648
        %v744 = vsel %vm742, %v743, %v741
        %v745 = vrsqrt.pop %v684
        %v746 = vmul.f32 %v684, %v745
        %vm747 = vcmp.eq.f32.partialorder %v684, inf
        %v748 = vsel %vm747, %v684, %v746
        %vm749 = vcmp.eq.f32.partialorder %v684, 0.0
        %v750 = vand.u32 %v684, 2147483648
        %v751 = vsel %vm749, %v750, %v748
        %v752 = vrsqrt.pop %v685
        %v753 = vmul.f32 %v685, %v752
        %vm754 = vcmp.eq.f32.partialorder %v685, inf
        %v755 = vsel %vm754, %v685, %v753
        %vm756 = vcmp.eq.f32.partialorder %v685, 0.0
        %v757 = vand.u32 %v685, 2147483648
        %v758 = vsel %vm756, %v757, %v755
        %v759 = vrsqrt.pop %v686
        %v760 = vmul.f32 %v686, %v759
        %vm761 = vcmp.eq.f32.partialorder %v686, inf
        %v762 = vsel %vm761, %v686, %v760
        %vm763 = vcmp.eq.f32.partialorder %v686, 0.0
        %v764 = vand.u32 %v686, 2147483648
        %v765 = vsel %vm763, %v764, %v762
        %v766 = vrsqrt.pop %v687
        %v767 = vmul.f32 %v687, %v766
        %vm768 = vcmp.eq.f32.partialorder %v687, inf
        %v769 = vsel %vm768, %v687, %v767
        %vm770 = vcmp.eq.f32.partialorder %v687, 0.0
        %v771 = vand.u32 %v687, 2147483648
        %v772 = vsel %vm770, %v771, %v769
        %v773 = vrsqrt.pop %v688
        %v774 = vmul.f32 %v688, %v773
        %vm775 = vcmp.eq.f32.partialorder %v688, inf
        %v776 = vsel %vm775, %v688, %v774
        %vm777 = vcmp.eq.f32.partialorder %v688, 0.0
        %v778 = vand.u32 %v688, 2147483648
        %v779 = vsel %vm777, %v778, %v776
        %v780 = vmul.f32 %v695, %v611
        %v781 = vmul.f32 %v702, %v612
        %v782 = vmul.f32 %v709, %v613
        %v783 = vmul.f32 %v716, %v614
        %v784 = vmul.f32 %v723, %v615
        %v785 = vmul.f32 %v730, %v616
        %v786 = vmul.f32 %v737, %v617
        %v787 = vmul.f32 %v744, %v618
        %v788 = vmul.f32 %v751, %v619
        %v789 = vmul.f32 %v758, %v620
        %v790 = vmul.f32 %v765, %v621
        %v791 = vmul.f32 %v772, %v622
        %v792 = vmul.f32 %v779, %v623
        %s793 = smul.u32 %s19, 104
        %v794 = vlaneseq
        %v795 = vshrl.u32 %v794, 7
        %v796 = vadd.s32 %v795, 8
        %v797 = vadd.s32 %v795, 16
        %v798 = vadd.s32 %v795, 24
        %v799 = vadd.s32 %v795, 32
        %v800 = vadd.s32 %v795, 40
        %v801 = vadd.s32 %v795, 48
        %v802 = vadd.s32 %v795, 56
        %v803 = vadd.s32 %v795, 64
        %v804 = vadd.s32 %v795, 72
        %v805 = vadd.s32 %v795, 80
        %v806 = vadd.s32 %v795, 88
        %v807 = vadd.s32 %v795, 96
        %v808 = vstv %s793
        %v809 = vadd.s32 %v808, %v795
        %v810 = vadd.s32 %v808, %v796
        %v811 = vadd.s32 %v808, %v797
        %v812 = vadd.s32 %v808, %v798
        %v813 = vadd.s32 %v808, %v799
        %v814 = vadd.s32 %v808, %v800
        %v815 = vadd.s32 %v808, %v801
        %v816 = vadd.s32 %v808, %v802
        %v817 = vadd.s32 %v808, %v803
        %v818 = vadd.s32 %v808, %v804
        %v819 = vadd.s32 %v808, %v805
        %v820 = vadd.s32 %v808, %v806
        %v821 = vadd.s32 %v808, %v807
        %vm822 = vcmp.lt.s32.totalorder %v809, 200
        %vm823 = vcmp.lt.s32.totalorder %v810, 200
        %vm824 = vcmp.lt.s32.totalorder %v811, 200
        %vm825 = vcmp.lt.s32.totalorder %v812, 200
        %vm826 = vcmp.lt.s32.totalorder %v813, 200
        %vm827 = vcmp.lt.s32.totalorder %v814, 200
        %vm828 = vcmp.lt.s32.totalorder %v815, 200
        %vm829 = vcmp.lt.s32.totalorder %v816, 200
        %vm830 = vcmp.lt.s32.totalorder %v817, 200
        %vm831 = vcmp.lt.s32.totalorder %v818, 200
        %vm832 = vcmp.lt.s32.totalorder %v819, 200
        %vm833 = vcmp.lt.s32.totalorder %v820, 200
        %vm834 = vcmp.lt.s32.totalorder %v821, 200
        %v835 = vsel %vm822, %v780, 0.0
        %v836 = vsel %vm823, %v781, 0.0
        %v837 = vsel %vm824, %v782, 0.0
        %v838 = vsel %vm825, %v783, 0.0
        %v839 = vsel %vm826, %v784, 0.0
        %v840 = vsel %vm827, %v785, 0.0
        %v841 = vsel %vm828, %v786, 0.0
        %v842 = vsel %vm829, %v787, 0.0
        %v843 = vsel %vm830, %v788, 0.0
        %v844 = vsel %vm831, %v789, 0.0
        %v845 = vsel %vm832, %v790, 0.0
        %v846 = vsel %vm833, %v791, 0.0
        %v847 = vsel %vm834, %v792, 0.0
        %vm848 = vcmask 7168
        %v849 = vsel %vm848, %v835, 0.0
        %v850 = vsel %vm848, %v836, 0.0
        %v851 = vadd.f32 %v849, %v850
        %v852 = vsel %vm848, %v837, 0.0
        %v853 = vadd.f32 %v851, %v852
        %v854 = vsel %vm848, %v838, 0.0
        %v855 = vadd.f32 %v853, %v854
        %v856 = vsel %vm848, %v839, 0.0
        %v857 = vadd.f32 %v855, %v856
        %v858 = vsel %vm848, %v840, 0.0
        %v859 = vadd.f32 %v857, %v858
        %v860 = vsel %vm848, %v841, 0.0
        %v861 = vadd.f32 %v859, %v860
        %v862 = vsel %vm848, %v842, 0.0
        %v863 = vadd.f32 %v861, %v862
        %v864 = vsel %vm848, %v843, 0.0
        %v865 = vadd.f32 %v863, %v864
        %v866 = vsel %vm848, %v844, 0.0
        %v867 = vadd.f32 %v865, %v866
        %v868 = vsel %vm848, %v845, 0.0
        %v869 = vadd.f32 %v867, %v868
        %v870 = vsel %vm848, %v846, 0.0
        %v871 = vadd.f32 %v869, %v870
        %v872 = vsel %vm848, %v847, 0.0
        %v873 = vadd.f32 %v871, %v872
        %v874 = vrot.slane %v873, 4
        %v875 = vadd.f32 %v873, %v874
        %v876 = vrot.slane %v875, 2
        %v877 = vadd.f32 %v875, %v876
        %v878 = vrot.slane %v877, 1
        %v879 = vadd.f32 %v877, %v878
        %881 = vset.pattern.permute.xlu0 0
        %882 = vperm.xlu0 %881, %v879
        %v883 = vpop.permute.xlu0 %882
        %885 = vst [vmem:[%s197] sm:$0xff] %v883
        %s886 = sand.u32 %s79, 1
        %s887 = scalar_lea.sflag [#allocation4], %s886
        %s888 = sand.u32 %s79, 1
        %s889 = smul.addr %s888, 8
        %s890 = scalar_lea.vmem [#allocation5], %s889
        // Predicated region
        $region33: #{tpu_custom_call.1} parent=27 // pred_check
          %p891 = pneg %p89
        $region34: #{tpu_custom_call.1} parent=27 // pred_check_branch
          %893 = sbr.rel (%p891) target = $region36
        $region35: #{tpu_custom_call.1} parent=27 // pred_region
          %s895 = ssub.s32 128, 128
          %896 = vsyncadd %s887, %s895
          %s897 = smul.addr %s19, 128
          %s898 = scalar_lea.hbm %s2, %s897
          %s900 = sshll.u32 %s890, 4
          %s901 = int_to_ptr.vmem [resolvable:$true] %s900
          %903 = dma.vmem_to_hbm [thread:$0]  %s901, 128, %s898, %s887
        $region36: #{tpu_custom_call.1} parent=27 // pred_fallthru
          _
      $region28: #{tpu_custom_call.1} parent=5 // pred_fallthru
        _
      %p904 = scmp.le.s32.totalorder 2, %s14
      // Predicated region
      $region37: #{tpu_custom_call.1} parent=5 // pred_check
        %p905 = pneg %p904
      $region38: #{tpu_custom_call.1} parent=5 // pred_check_branch
        %907 = sbr.rel (%p905) target = $region40
      $region39: #{tpu_custom_call.1} parent=5 // pred_region
        %s908 = ssub.s32 %s14, 2
        // Predicated region
        $region41: #{tpu_custom_call.1} parent=39 // pred_check
          %p909 = pneg %p95
        $region42: #{tpu_custom_call.1} parent=39 // pred_check_branch
          %911 = sbr.rel (%p909) target = $region44
        $region43: #{tpu_custom_call.1} parent=39 // pred_region
          %s912 = sand.u32 %s80, 1
          %s913 = scalar_lea.sflag [#allocation4], %s912
          %s914 = sand.u32 %s80, 1
          %s915 = smul.addr %s914, 8
          %s916 = scalar_lea.vmem [#allocation5], %s915
          %917 = dma.done %s913, 128
        $region44: #{tpu_custom_call.1} parent=39 // pred_fallthru
          _
      $region40: #{tpu_custom_call.1} parent=5 // pred_fallthru
        _
    $region6: #{tpu_custom_call.1} parent=1 // loop_footer
      %s18 = sadd.s32 1, %s14
    $region7: #{tpu_custom_call.1} parent=1 // loop_footer_branch
      %13 = sbr.rel target = $region3
    $region8: #{tpu_custom_call.1} parent=1 // loop_exit
      _
    %918 = vsyncpa [#allocation3], 1
    %s919 = scalar_lea.sflag [#allocation3], 1
    %920 = vsyncpa %s919, 1
    %921 = vsyncpa [#allocation4], 1
    %s922 = scalar_lea.sflag [#allocation4], 1
    %923 = vsyncpa %s922, 1

</llo_original>
